<compile_context>
chip_gen: v7x
topology: tpu7x:2x2x1
jax: 0.10.0
libtpu: 0.0.40
codegen_flags: <defaults>
</compile_context>

<pallas_src>
import functools

import jax
import jax.numpy as jnp
from jax.experimental import pallas as pl
from jax.experimental.pallas import tpu as pltpu


def _round_up(x, m):
    return ((x + m - 1) // m) * m


def _mlp_kernel(z_ref, w1_ref, b1_ref, w2_ref, b2_ref,
                gamma_ref, beta_ref, w3_ref, b3_ref, o_ref):
    # ---- Linear(latent_dim -> hidden) + LeakyReLU(0.2) ----
    # z/W1 may be bf16 (single-pass MXU) or f32; accumulation is always f32.
    h1 = jnp.dot(z_ref[...], w1_ref[...],
                 preferred_element_type=jnp.float32)                  # (TB, H)
    h1 = h1 + b1_ref[...]
    h1 = jnp.where(h1 > 0, h1, 0.2 * h1)

    # ---- Dropout(0.1): identity in eval mode ----
    # TODO(synk): training-mode dropout (stateful PRNG mask) not implemented.

    # ---- Linear(hidden -> hidden//2) ----
    h2 = jnp.dot(h1, w2_ref[...], preferred_element_type=jnp.float32)  # (TB, H/2)
    h2 = h2 + b2_ref[...]

    # ---- LayerNorm(hidden//2), biased variance, eps = 1e-5 (PyTorch default) ----
    mean = jnp.mean(h2, axis=-1, keepdims=True)
    cent = h2 - mean
    var = jnp.mean(cent * cent, axis=-1, keepdims=True)
    h2 = cent * jax.lax.rsqrt(var + 1e-5)
    h2 = h2 * gamma_ref[...] + beta_ref[...]

    # ---- LeakyReLU(0.2) ----
    h2 = jnp.where(h2 > 0, h2, 0.2 * h2)

    # ---- Linear(hidden//2 -> 1): VPU multiply + cross-lane reduce.
    # (An N=1 MXU matmul would use 1 of 128/256 result lanes; the XLU reduce
    #  slot is idle here, so this is free.)  b3 is a 1-D SMEM scalar.
    out = jnp.sum(h2 * w3_ref[...], axis=-1, keepdims=True) + b3_ref[0]  # (TB, 1)
    o_ref[...] = out.astype(o_ref.dtype)


@functools.partial(jax.jit, static_argnames=("block_b",))
def domain_discriminator_forward(z, params, block_b=2048):
    """z: (B, latent_dim), f32 or bf16 -> logits (B, 1) float32."""
    B, D = z.shape
    w1, b1, w2, b2, gamma, beta, w3, b3 = params
    H = w1.shape[1]
    H2 = w2.shape[1]

    # w3 as a (1, H2) row for the VPU + lane-reduce final layer; b3 as 1-D SMEM.
    w3_row = w3.reshape(1, H2).astype(jnp.float32)
    b3_vec = b3.reshape(1).astype(jnp.float32)

    # ---- Tile sizing ----
    # Sublane-aligned cap; then pick eff_b so the grid has an even number of
    # steps (>= 2 whenever the batch allows) so both v7x TensorCores get equal
    # work, while each step stays large enough to amortize the ~0.35 us
    # per-grid-step overhead.
    block_b = max(8, _round_up(block_b, 8))
    steps = pl.cdiv(B, block_b)
    if steps < 2:
        steps = 2
    if steps % 2:
        steps += 1
    eff_b = min(block_b, max(8, _round_up(pl.cdiv(B, steps), 8)))
    grid = (pl.cdiv(B, eff_b),)
    # NOTE: B need not be a multiple of eff_b; Pallas masks the partial last
    # block (per-row math => OOB-tail garbage cannot contaminate valid rows,
    # and OOB writes are dropped).  No wrapper-side jnp.pad copy of z.

    out = pl.pallas_call(
        _mlp_kernel,
        out_shape=jax.ShapeDtypeStruct((B, 1), jnp.float32),
        grid_spec=pltpu.PrefetchScalarGridSpec(
            num_scalar_prefetch=0,
            grid=grid,
            in_specs=[
                pl.BlockSpec((eff_b, D), lambda i: (i, 0)),   # z tile (streamed)
                pl.BlockSpec((D, H),     lambda i: (0, 0)),   # W1 (resident)
                pl.BlockSpec((1, H),     lambda i: (0, 0)),   # b1
                pl.BlockSpec((H, H2),    lambda i: (0, 0)),   # W2
                pl.BlockSpec((1, H2),    lambda i: (0, 0)),   # b2
                pl.BlockSpec((1, H2),    lambda i: (0, 0)),   # LN gamma
                pl.BlockSpec((1, H2),    lambda i: (0, 0)),   # LN beta
                pl.BlockSpec((1, H2),    lambda i: (0, 0)),   # W3 row
                pl.BlockSpec(memory_space=pltpu.MemorySpace.SMEM),  # b3 (1,)
            ],
            out_specs=pl.BlockSpec((eff_b, 1), lambda i: (i, 0)),
        ),
        compiler_params=pltpu.CompilerParams(
            dimension_semantics=("parallel",)),
    )(z, w1, b1, w2, b2, gamma, beta, w3_row, b3_vec)

    return out


def init_params(key, latent_dim, hidden_dim=64):
    """Deterministic synthetic params. Linear weights stored as (in, out)."""
    h2 = hidden_dim // 2
    k1, k2, k3, k4, k5, k6 = jax.random.split(key, 6)

    def lin(kw, kb, fan_in, fan_out):
        bound = 1.0 / jnp.sqrt(fan_in)
        w = jax.random.uniform(kw, (fan_in, fan_out), jnp.float32, -bound, bound)
        b = jax.random.uniform(kb, (1, fan_out), jnp.float32, -bound, bound)
        return w, b

    w1, b1 = lin(k1, k2, latent_dim, hidden_dim)
    w2, b2 = lin(k3, k4, hidden_dim, h2)
    w3, b3 = lin(k5, k6, h2, 1)
    gamma = jnp.ones((1, h2), jnp.float32)
    beta = jnp.zeros((1, h2), jnp.float32)
    return (w1, b1, w2, b2, gamma, beta, w3, b3)


def _reference_forward(z, params):
    """Plain-JAX reference (everything up-cast to f32, same math as kernel)."""
    w1, b1, w2, b2, gamma, beta, w3, b3 = params
    f32 = lambda a: a.astype(jnp.float32)
    h = f32(z) @ f32(w1) + f32(b1)
    h = jnp.where(h > 0, h, 0.2 * h)
    h = h @ f32(w2) + f32(b2)
    mean = h.mean(-1, keepdims=True)
    var = ((h - mean) ** 2).mean(-1, keepdims=True)
    h = (h - mean) * jax.lax.rsqrt(var + 1e-5) * f32(gamma) + f32(beta)
    h = jnp.where(h > 0, h, 0.2 * h)
    return h @ f32(w3) + f32(b3)


if __name__ == "__main__":
    latent_dim = 32
    hidden_dim = 64

    key = jax.random.PRNGKey(0)
    kp, kz1, kz2 = jax.random.split(key, 3)
    params = init_params(kp, latent_dim, hidden_dim)

    # Check 1: f32 stream, small batch that does NOT divide the tile.
    # eff_b -> 32, grid = 2 steps, last block partial (no wrapper jnp.pad).
    batch = 50
    z = jax.random.normal(kz1, (batch, latent_dim), jnp.float32)
    logits = domain_discriminator_forward(z, params)
    logits = jax.block_until_ready(logits)
    ref = _reference_forward(z, params)
    assert logits.shape == (batch, 1)
    assert jnp.allclose(logits, ref, atol=1e-4, rtol=1e-4), (
        f"mismatch: max abs err {jnp.max(jnp.abs(logits - ref))}")

    # Check 2: bf16 z stream + bf16 W1 (single-pass bf16 MXU, half the HBM
    # traffic on the dominant stream).  eff_b -> 512, grid = 2 steps.
    # Reference uses the same bf16-rounded operands so the tolerance stays tight.
    batch2 = 1024
    z2 = jax.random.normal(kz2, (batch2, latent_dim), jnp.float32).astype(jnp.bfloat16)
    params_bf = (params[0].astype(jnp.bfloat16),) + params[1:]
    logits2 = domain_discriminator_forward(z2, params_bf)
    logits2 = jax.block_until_ready(logits2)
    ref2 = _reference_forward(z2, params_bf)
    assert logits2.shape == (batch2, 1)
    assert jnp.allclose(logits2, ref2, atol=2e-4, rtol=2e-4), (
        f"mismatch: max abs err {jnp.max(jnp.abs(logits2 - ref2))}")

    print("KERNEL_OK")
</pallas_src>

<mosaic_0001>
module attributes {stable_mosaic.version = 11 : i64} {
  func.func @_mlp_kernel(%arg0: i32, %arg1: memref<32x32xf32, #tpu.memory_space<vmem>>, %arg2: memref<32x64xf32, #tpu.memory_space<vmem>>, %arg3: memref<1x64xf32, #tpu.memory_space<vmem>>, %arg4: memref<64x32xf32, #tpu.memory_space<vmem>>, %arg5: memref<1x32xf32, #tpu.memory_space<vmem>>, %arg6: memref<1x32xf32, #tpu.memory_space<vmem>>, %arg7: memref<1x32xf32, #tpu.memory_space<vmem>>, %arg8: memref<1x32xf32, #tpu.memory_space<vmem>>, %arg9: memref<1xf32, #tpu.memory_space<smem>>, %arg10: memref<32x1xf32, #tpu.memory_space<vmem>>) attributes {dimension_semantics = [#tpu.dimension_semantics<parallel>], iteration_bounds = array<i64: 2>, scalar_prefetch = 0 : i64, scratch_operands = 0 : i64, tpu.core_type = #tpu.core_type<tc>, window_params = [{transform_indices = @transform_0, window_bounds = array<i64: 32, 32>}, {pipeline_mode = #tpu.pipeline_mode<synchronous>, transform_indices = @transform_1, window_bounds = array<i64: 32, 64>}, {pipeline_mode = #tpu.pipeline_mode<synchronous>, transform_indices = @transform_2, window_bounds = array<i64: 1, 64>}, {pipeline_mode = #tpu.pipeline_mode<synchronous>, transform_indices = @transform_3, window_bounds = array<i64: 64, 32>}, {pipeline_mode = #tpu.pipeline_mode<synchronous>, transform_indices = @transform_4, window_bounds = array<i64: 1, 32>}, {pipeline_mode = #tpu.pipeline_mode<synchronous>, transform_indices = @transform_5, window_bounds = array<i64: 1, 32>}, {pipeline_mode = #tpu.pipeline_mode<synchronous>, transform_indices = @transform_6, window_bounds = array<i64: 1, 32>}, {pipeline_mode = #tpu.pipeline_mode<synchronous>, transform_indices = @transform_7, window_bounds = array<i64: 1, 32>}, {transform_indices = @transform_8, window_bounds = array<i64: 1>}, {transform_indices = @transform_9, window_bounds = array<i64: 32, 1>}]} {
    %c0 = arith.constant 0 : index
    %c0_0 = arith.constant 0 : index
    %0 = vector.load %arg1[%c0, %c0_0] : memref<32x32xf32, #tpu.memory_space<vmem>>, vector<32x32xf32>
    %c0_1 = arith.constant 0 : index
    %c0_2 = arith.constant 0 : index
    %1 = vector.load %arg2[%c0_1, %c0_2] : memref<32x64xf32, #tpu.memory_space<vmem>>, vector<32x64xf32>
    %cst = arith.constant dense<0.000000e+00> : vector<32x64xf32>
    %2 = tpu.matmul %0, %1, %cst {dimension_numbers = #tpu.dot_dimension_numbers<[1], [0], [0], [1], [0, 0, 1, 1], [], []>} : vector<32x32xf32>, vector<32x64xf32>, vector<32x64xf32> -> vector<32x64xf32>
    %c0_3 = arith.constant 0 : index
    %c0_4 = arith.constant 0 : index
    %3 = vector.load %arg3[%c0_3, %c0_4] : memref<1x64xf32, #tpu.memory_space<vmem>>, vector<1x64xf32>
    %4 = vector.broadcast %3 : vector<1x64xf32> to vector<32x64xf32>
    %5 = arith.addf %2, %4 : vector<32x64xf32>
    %cst_5 = arith.constant 0.000000e+00 : f32
    %6 = vector.broadcast %cst_5 : f32 to vector<32x64xf32>
    %7 = arith.cmpf ogt, %5, %6 : vector<32x64xf32>
    %cst_6 = arith.constant 2.000000e-01 : f32
    %8 = vector.broadcast %cst_6 : f32 to vector<32x64xf32>
    %9 = arith.mulf %8, %5 : vector<32x64xf32>
    %10 = arith.select %7, %5, %9 : vector<32x64xi1>, vector<32x64xf32>
    %c0_7 = arith.constant 0 : index
    %c0_8 = arith.constant 0 : index
    %11 = vector.load %arg4[%c0_7, %c0_8] : memref<64x32xf32, #tpu.memory_space<vmem>>, vector<64x32xf32>
    %cst_9 = arith.constant dense<0.000000e+00> : vector<32x32xf32>
    %12 = tpu.matmul %10, %11, %cst_9 {dimension_numbers = #tpu.dot_dimension_numbers<[1], [0], [0], [1], [0, 0, 1, 1], [], []>} : vector<32x64xf32>, vector<64x32xf32>, vector<32x32xf32> -> vector<32x32xf32>
    %c0_10 = arith.constant 0 : index
    %c0_11 = arith.constant 0 : index
    %13 = vector.load %arg5[%c0_10, %c0_11] : memref<1x32xf32, #tpu.memory_space<vmem>>, vector<1x32xf32>
    %14 = vector.broadcast %13 : vector<1x32xf32> to vector<32x32xf32>
    %15 = arith.addf %12, %14 : vector<32x32xf32>
    %cst_12 = arith.constant dense<0.000000e+00> : vector<32xf32>
    %16 = vector.multi_reduction <add>, %15, %cst_12 [1] : vector<32x32xf32> to vector<32xf32>
    %17 = vector.shape_cast %16 : vector<32xf32> to vector<32x1xf32>
    %cst_13 = arith.constant 3.200000e+01 : f32
    %18 = vector.broadcast %cst_13 : f32 to vector<32x1xf32>
    %19 = arith.divf %17, %18 : vector<32x1xf32>
    %20 = vector.broadcast %19 : vector<32x1xf32> to vector<32x32xf32>
    %21 = arith.subf %15, %20 : vector<32x32xf32>
    %22 = arith.mulf %21, %21 : vector<32x32xf32>
    %cst_14 = arith.constant dense<0.000000e+00> : vector<32xf32>
    %23 = vector.multi_reduction <add>, %22, %cst_14 [1] : vector<32x32xf32> to vector<32xf32>
    %24 = vector.shape_cast %23 : vector<32xf32> to vector<32x1xf32>
    %cst_15 = arith.constant 3.200000e+01 : f32
    %25 = vector.broadcast %cst_15 : f32 to vector<32x1xf32>
    %26 = arith.divf %24, %25 : vector<32x1xf32>
    %cst_16 = arith.constant 9.99999974E-6 : f32
    %27 = vector.broadcast %cst_16 : f32 to vector<32x1xf32>
    %28 = arith.addf %26, %27 : vector<32x1xf32>
    %29 = math.rsqrt %28 : vector<32x1xf32>
    %30 = vector.broadcast %29 : vector<32x1xf32> to vector<32x32xf32>
    %31 = arith.mulf %21, %30 : vector<32x32xf32>
    %c0_17 = arith.constant 0 : index
    %c0_18 = arith.constant 0 : index
    %32 = vector.load %arg6[%c0_17, %c0_18] : memref<1x32xf32, #tpu.memory_space<vmem>>, vector<1x32xf32>
    %33 = vector.broadcast %32 : vector<1x32xf32> to vector<32x32xf32>
    %34 = arith.mulf %31, %33 : vector<32x32xf32>
    %c0_19 = arith.constant 0 : index
    %c0_20 = arith.constant 0 : index
    %35 = vector.load %arg7[%c0_19, %c0_20] : memref<1x32xf32, #tpu.memory_space<vmem>>, vector<1x32xf32>
    %36 = vector.broadcast %35 : vector<1x32xf32> to vector<32x32xf32>
    %37 = arith.addf %34, %36 : vector<32x32xf32>
    %cst_21 = arith.constant 0.000000e+00 : f32
    %38 = vector.broadcast %cst_21 : f32 to vector<32x32xf32>
    %39 = arith.cmpf ogt, %37, %38 : vector<32x32xf32>
    %cst_22 = arith.constant 2.000000e-01 : f32
    %40 = vector.broadcast %cst_22 : f32 to vector<32x32xf32>
    %41 = arith.mulf %40, %37 : vector<32x32xf32>
    %42 = arith.select %39, %37, %41 : vector<32x32xi1>, vector<32x32xf32>
    %c0_23 = arith.constant 0 : index
    %c0_24 = arith.constant 0 : index
    %43 = vector.load %arg8[%c0_23, %c0_24] : memref<1x32xf32, #tpu.memory_space<vmem>>, vector<1x32xf32>
    %44 = vector.broadcast %43 : vector<1x32xf32> to vector<32x32xf32>
    %45 = arith.mulf %42, %44 : vector<32x32xf32>
    %cst_25 = arith.constant dense<0.000000e+00> : vector<32xf32>
    %46 = vector.multi_reduction <add>, %45, %cst_25 [1] : vector<32x32xf32> to vector<32xf32>
    %47 = vector.shape_cast %46 : vector<32xf32> to vector<32x1xf32>
    %c0_26 = arith.constant 0 : index
    %48 = memref.load %arg9[%c0_26] : memref<1xf32, #tpu.memory_space<smem>>
    %49 = vector.broadcast %48 : f32 to vector<32x1xf32>
    %50 = arith.addf %47, %49 : vector<32x1xf32>
    %c0_27 = arith.constant 0 : index
    %c0_28 = arith.constant 0 : index
    %51 = vector.load %arg10[%c0_27, %c0_28] : memref<32x1xf32, #tpu.memory_space<vmem>>, vector<32x1xf32>
    tpu.vector_store %arg10[%c0_27, %c0_28], %50 {strides = array<i32>} : memref<32x1xf32, #tpu.memory_space<vmem>>, vector<32x1xf32>,
    return
  }
  func.func @transform_0(%arg0: i32) -> (i32, i32) {
    %c0_i32 = arith.constant 0 : i32
    %c0_i32_0 = arith.constant 0 : i32
    return %arg0, %c0_i32 : i32, i32
  }
  func.func @transform_1(%arg0: i32) -> (i32, i32) {
    %c0_i32 = arith.constant 0 : i32
    %c0_i32_0 = arith.constant 0 : i32
    %c0_i32_1 = arith.constant 0 : i32
    return %c0_i32, %c0_i32_0 : i32, i32
  }
  func.func @transform_2(%arg0: i32) -> (i32, i32) {
    %c0_i32 = arith.constant 0 : i32
    %c0_i32_0 = arith.constant 0 : i32
    %c0_i32_1 = arith.constant 0 : i32
    return %c0_i32, %c0_i32_0 : i32, i32
  }
  func.func @transform_3(%arg0: i32) -> (i32, i32) {
    %c0_i32 = arith.constant 0 : i32
    %c0_i32_0 = arith.constant 0 : i32
    %c0_i32_1 = arith.constant 0 : i32
    return %c0_i32, %c0_i32_0 : i32, i32
  }
  func.func @transform_4(%arg0: i32) -> (i32, i32) {
    %c0_i32 = arith.constant 0 : i32
    %c0_i32_0 = arith.constant 0 : i32
    %c0_i32_1 = arith.constant 0 : i32
    return %c0_i32, %c0_i32_0 : i32, i32
  }
  func.func @transform_5(%arg0: i32) -> (i32, i32) {
    %c0_i32 = arith.constant 0 : i32
    %c0_i32_0 = arith.constant 0 : i32
    %c0_i32_1 = arith.constant 0 : i32
    return %c0_i32, %c0_i32_0 : i32, i32
  }
  func.func @transform_6(%arg0: i32) -> (i32, i32) {
    %c0_i32 = arith.constant 0 : i32
    %c0_i32_0 = arith.constant 0 : i32
    %c0_i32_1 = arith.constant 0 : i32
    return %c0_i32, %c0_i32_0 : i32, i32
  }
  func.func @transform_7(%arg0: i32) -> (i32, i32) {
    %c0_i32 = arith.constant 0 : i32
    %c0_i32_0 = arith.constant 0 : i32
    %c0_i32_1 = arith.constant 0 : i32
    return %c0_i32, %c0_i32_0 : i32, i32
  }
  func.func @transform_8(%arg0: i32) -> i32 {
    %c0_i32 = arith.constant 0 : i32
    %c0_i32_0 = arith.constant 0 : i32
    return %c0_i32 : i32
  }
  func.func @transform_9(%arg0: i32) -> (i32, i32) {
    %c0_i32 = arith.constant 0 : i32
    %c0_i32_0 = arith.constant 0 : i32
    return %arg0, %c0_i32 : i32, i32
  }
}

</mosaic_0001>

<llo_original>
// kernel: domain_discriminator_forward.1
$region0: #{domain_discriminator_forward.1}
  #allocation0 [shape = 'u32[]', space=smem, size = 0x4, offset = 0x4, fixed_abs, tag = 'smem constant byte address 0x4 - core index']
  #allocation1 [shape = 'u32[144,128]{1,0:T(1,128)}', space=vmem, size = 0x12000, scoped, tag = 'internal scratch']
  #allocation2 [shape = 'f32[1]{0:T(128)S(6)}', space=smem, size = 0x200, scoped, tag = 'scoped memory for domain_discriminator_forward.1']
  %s0 = inlined_call_operand.vmem [shape: f32[50,32], index: 0, kind: input, shape index: {}]
  %s1 = inlined_call_operand.vmem [shape: f32[32,64], index: 1, kind: input, shape index: {}]
  %s2 = inlined_call_operand.vmem [shape: f32[1,64], index: 2, kind: input, shape index: {}]
  %s3 = inlined_call_operand.vmem [shape: f32[64,32], index: 3, kind: input, shape index: {}]
  %s4 = inlined_call_operand.vmem [shape: f32[1,32], index: 4, kind: input, shape index: {}]
  %s5 = inlined_call_operand.vmem [shape: f32[1,32], index: 5, kind: input, shape index: {}]
  %s6 = inlined_call_operand.vmem [shape: f32[1,32], index: 6, kind: input, shape index: {}]
  %s7 = inlined_call_operand.vmem [shape: f32[1,32], index: 7, kind: input, shape index: {}]
  %s8 = inlined_call_operand.<no memory space> [shape: f32[1], index: 8, kind: input, shape index: {}]
  %s9 = inlined_call_operand.vmem [shape: f32[50,1], index: 9, kind: output, shape index: {}]
  %s10 = sld [smem:[#allocation0]]
  $region117: #{domain_discriminator_forward.1} parent=0
    _
  %s12 = ssub.s32 1, %s10
  %s13 = scalar_select 0, %s12, %s10
  %14 = sst [smem:[#allocation2]] %s8
  $region1: #{domain_discriminator_forward.1} parent=0
    #allocation3 [shape = 'u8[32768]{0}', space=vmem, size = 0x8000, scoped, tag = 'output window, operand 0']
    loop: start=0, step=1, limit=4
    $region2: #{domain_discriminator_forward.1} parent=1 // loop_pre_header
      _
    $region3: #{domain_discriminator_forward.1} parent=1 // loop_header
      %s16 = sphi 0, %s20
      %p17 = scmp.ge.s32.totalorder %s16, 4
      %s26 = sphi 0, %s28
      %s29 = sphi 0, %s26
      %s30 = sphi 0, %s29
      %s46 = sphi 0, %s30
      %s50 = sphi 0, %s50
      %s52 = sphi 0, %s50
      %s53 = sphi 0, %s52
      %s67 = sphi 0, %s53
      %s71 = sphi 0, %s71
      %s73 = sphi 0, %s71
      %s74 = sphi 0, %s73
      %s88 = sphi 0, %s74
      %s92 = sphi 0, %s92
      %s94 = sphi 0, %s92
      %s95 = sphi 0, %s94
      %s109 = sphi 0, %s95
      %s113 = sphi 0, %s113
      %s115 = sphi 0, %s113
      %s116 = sphi 0, %s115
      %s130 = sphi 0, %s116
      %s134 = sphi 0, %s134
      %s136 = sphi 0, %s134
      %s137 = sphi 0, %s136
      %s151 = sphi 0, %s137
      %s155 = sphi 0, %s155
      %s157 = sphi 0, %s155
      %s158 = sphi 0, %s157
      %s172 = sphi 0, %s158
      %s176 = sphi 0, %s176
      %s178 = sphi 0, %s176
      %s179 = sphi 0, %s178
      %s193 = sphi 0, %s179
      %s197 = sphi 0, %s197
      %s199 = sphi 0, %s197
      %s200 = sphi 0, %s199
      %s214 = sphi 0, %s200
      %s220 = sphi 0, %s222
      %s223 = sphi 0, %s220
      %s224 = sphi 0, %s223
      %s240 = sphi 0, %s224
    $region4: #{domain_discriminator_forward.1} parent=1 // loop_header_branch
      %19 = sbr.rel (%p17) target = $region8
    $region5: #{domain_discriminator_forward.1} parent=1 // loop_body
      %s21 = ssub.s32 %s16, 1
      %s22 = ssub.s32 %s16, 2
      %s23 = sadd.s32 %s16, 1
      %s24 = ssub.s32 %s16, %s23
      %p25 = scmp.eq.s32.totalorder %s24, 0
      %s27 = sadd.s32 %s26, 1
      %s28 = scalar_select %p25, %s26, %s27
      %p31 = pneg %p25
      %p32 = scmp.eq.s32.totalorder %s16, 1
      %p33 = por %p31, %p32
      %p34 = scmp.ne.s32.totalorder %s26, %s29
      %p35 = scmp.eq.s32.totalorder %s16, 0
      %p36 = por %p34, %p35
      %p37 = scmp.ne.s32.totalorder %s26, %s29
      %p38 = scmp.eq.s32.totalorder %s21, 1
      %p39 = por %p37, %p38
      %p40 = scmp.ne.s32.totalorder %s29, %s30
      %p41 = scmp.eq.s32.totalorder %s21, 0
      %p42 = por %p40, %p41
      %p43 = scmp.ne.s32.totalorder %s29, %s30
      %p44 = scmp.eq.s32.totalorder %s22, 1
      %p45 = por %p43, %p44
      %p47 = scmp.ne.s32.totalorder %s30, %s46
      %p48 = scmp.eq.s32.totalorder %s22, 0
      %p49 = por %p47, %p48
      %s51 = sadd.s32 %s50, 1
      %p54 = scmp.eq.s32.totalorder %s16, 1
      %p55 = scmp.ne.s32.totalorder %s50, %s52
      %p56 = scmp.eq.s32.totalorder %s16, 0
      %p57 = por %p55, %p56
      %p58 = scmp.ne.s32.totalorder %s50, %s52
      %p59 = scmp.eq.s32.totalorder %s21, 1
      %p60 = por %p58, %p59
      %p61 = scmp.ne.s32.totalorder %s52, %s53
      %p62 = scmp.eq.s32.totalorder %s21, 0
      %p63 = por %p61, %p62
      %p64 = scmp.ne.s32.totalorder %s52, %s53
      %p65 = scmp.eq.s32.totalorder %s22, 1
      %p66 = por %p64, %p65
      %p68 = scmp.ne.s32.totalorder %s53, %s67
      %p69 = scmp.eq.s32.totalorder %s22, 0
      %p70 = por %p68, %p69
      %s72 = sadd.s32 %s71, 1
      %p75 = scmp.eq.s32.totalorder %s16, 1
      %p76 = scmp.ne.s32.totalorder %s71, %s73
      %p77 = scmp.eq.s32.totalorder %s16, 0
      %p78 = por %p76, %p77
      %p79 = scmp.ne.s32.totalorder %s71, %s73
      %p80 = scmp.eq.s32.totalorder %s21, 1
      %p81 = por %p79, %p80
      %p82 = scmp.ne.s32.totalorder %s73, %s74
      %p83 = scmp.eq.s32.totalorder %s21, 0
      %p84 = por %p82, %p83
      %p85 = scmp.ne.s32.totalorder %s73, %s74
      %p86 = scmp.eq.s32.totalorder %s22, 1
      %p87 = por %p85, %p86
      %p89 = scmp.ne.s32.totalorder %s74, %s88
      %p90 = scmp.eq.s32.totalorder %s22, 0
      %p91 = por %p89, %p90
      %s93 = sadd.s32 %s92, 1
      %p96 = scmp.eq.s32.totalorder %s16, 1
      %p97 = scmp.ne.s32.totalorder %s92, %s94
      %p98 = scmp.eq.s32.totalorder %s16, 0
      %p99 = por %p97, %p98
      %p100 = scmp.ne.s32.totalorder %s92, %s94
      %p101 = scmp.eq.s32.totalorder %s21, 1
      %p102 = por %p100, %p101
      %p103 = scmp.ne.s32.totalorder %s94, %s95
      %p104 = scmp.eq.s32.totalorder %s21, 0
      %p105 = por %p103, %p104
      %p106 = scmp.ne.s32.totalorder %s94, %s95
      %p107 = scmp.eq.s32.totalorder %s22, 1
      %p108 = por %p106, %p107
      %p110 = scmp.ne.s32.totalorder %s95, %s109
      %p111 = scmp.eq.s32.totalorder %s22, 0
      %p112 = por %p110, %p111
      %s114 = sadd.s32 %s113, 1
      %p117 = scmp.eq.s32.totalorder %s16, 1
      %p118 = scmp.ne.s32.totalorder %s113, %s115
      %p119 = scmp.eq.s32.totalorder %s16, 0
      %p120 = por %p118, %p119
      %p121 = scmp.ne.s32.totalorder %s113, %s115
      %p122 = scmp.eq.s32.totalorder %s21, 1
      %p123 = por %p121, %p122
      %p124 = scmp.ne.s32.totalorder %s115, %s116
      %p125 = scmp.eq.s32.totalorder %s21, 0
      %p126 = por %p124, %p125
      %p127 = scmp.ne.s32.totalorder %s115, %s116
      %p128 = scmp.eq.s32.totalorder %s22, 1
      %p129 = por %p127, %p128
      %p131 = scmp.ne.s32.totalorder %s116, %s130
      %p132 = scmp.eq.s32.totalorder %s22, 0
      %p133 = por %p131, %p132
      %s135 = sadd.s32 %s134, 1
      %p138 = scmp.eq.s32.totalorder %s16, 1
      %p139 = scmp.ne.s32.totalorder %s134, %s136
      %p140 = scmp.eq.s32.totalorder %s16, 0
      %p141 = por %p139, %p140
      %p142 = scmp.ne.s32.totalorder %s134, %s136
      %p143 = scmp.eq.s32.totalorder %s21, 1
      %p144 = por %p142, %p143
      %p145 = scmp.ne.s32.totalorder %s136, %s137
      %p146 = scmp.eq.s32.totalorder %s21, 0
      %p147 = por %p145, %p146
      %p148 = scmp.ne.s32.totalorder %s136, %s137
      %p149 = scmp.eq.s32.totalorder %s22, 1
      %p150 = por %p148, %p149
      %p152 = scmp.ne.s32.totalorder %s137, %s151
      %p153 = scmp.eq.s32.totalorder %s22, 0
      %p154 = por %p152, %p153
      %s156 = sadd.s32 %s155, 1
      %p159 = scmp.eq.s32.totalorder %s16, 1
      %p160 = scmp.ne.s32.totalorder %s155, %s157
      %p161 = scmp.eq.s32.totalorder %s16, 0
      %p162 = por %p160, %p161
      %p163 = scmp.ne.s32.totalorder %s155, %s157
      %p164 = scmp.eq.s32.totalorder %s21, 1
      %p165 = por %p163, %p164
      %p166 = scmp.ne.s32.totalorder %s157, %s158
      %p167 = scmp.eq.s32.totalorder %s21, 0
      %p168 = por %p166, %p167
      %p169 = scmp.ne.s32.totalorder %s157, %s158
      %p170 = scmp.eq.s32.totalorder %s22, 1
      %p171 = por %p169, %p170
      %p173 = scmp.ne.s32.totalorder %s158, %s172
      %p174 = scmp.eq.s32.totalorder %s22, 0
      %p175 = por %p173, %p174
      %s177 = sadd.s32 %s176, 1
      %p180 = scmp.eq.s32.totalorder %s16, 1
      %p181 = scmp.ne.s32.totalorder %s176, %s178
      %p182 = scmp.eq.s32.totalorder %s16, 0
      %p183 = por %p181, %p182
      %p184 = scmp.ne.s32.totalorder %s176, %s178
      %p185 = scmp.eq.s32.totalorder %s21, 1
      %p186 = por %p184, %p185
      %p187 = scmp.ne.s32.totalorder %s178, %s179
      %p188 = scmp.eq.s32.totalorder %s21, 0
      %p189 = por %p187, %p188
      %p190 = scmp.ne.s32.totalorder %s178, %s179
      %p191 = scmp.eq.s32.totalorder %s22, 1
      %p192 = por %p190, %p191
      %p194 = scmp.ne.s32.totalorder %s179, %s193
      %p195 = scmp.eq.s32.totalorder %s22, 0
      %p196 = por %p194, %p195
      %s198 = sadd.s32 %s197, 1
      %p201 = scmp.eq.s32.totalorder %s16, 1
      %p202 = scmp.ne.s32.totalorder %s197, %s199
      %p203 = scmp.eq.s32.totalorder %s16, 0
      %p204 = por %p202, %p203
      %p205 = scmp.ne.s32.totalorder %s197, %s199
      %p206 = scmp.eq.s32.totalorder %s21, 1
      %p207 = por %p205, %p206
      %p208 = scmp.ne.s32.totalorder %s199, %s200
      %p209 = scmp.eq.s32.totalorder %s21, 0
      %p210 = por %p208, %p209
      %p211 = scmp.ne.s32.totalorder %s199, %s200
      %p212 = scmp.eq.s32.totalorder %s22, 1
      %p213 = por %p211, %p212
      %p215 = scmp.ne.s32.totalorder %s200, %s214
      %p216 = scmp.eq.s32.totalorder %s22, 0
      %p217 = por %p215, %p216
      %s218 = ssub.s32 %s16, %s23
      %p219 = scmp.eq.s32.totalorder %s218, 0
      %s221 = sadd.s32 %s220, 1
      %s222 = scalar_select %p219, %s220, %s221
      %p225 = pneg %p219
      %p226 = scmp.eq.s32.totalorder %s16, 1
      %p227 = por %p225, %p226
      %p228 = scmp.ne.s32.totalorder %s220, %s223
      %p229 = scmp.eq.s32.totalorder %s16, 0
      %p230 = por %p228, %p229
      %p231 = scmp.ne.s32.totalorder %s220, %s223
      %p232 = scmp.eq.s32.totalorder %s21, 1
      %p233 = por %p231, %p232
      %p234 = scmp.ne.s32.totalorder %s223, %s224
      %p235 = scmp.eq.s32.totalorder %s21, 0
      %p236 = por %p234, %p235
      %p237 = scmp.ne.s32.totalorder %s223, %s224
      %p238 = scmp.eq.s32.totalorder %s22, 1
      %p239 = por %p237, %p238
      %p241 = scmp.ne.s32.totalorder %s224, %s240
      %p242 = scmp.eq.s32.totalorder %s22, 0
      %p243 = por %p241, %p242
      %p244 = scmp.le.s32.totalorder 1, %s16
      %p245 = scmp.lt.s32.totalorder %s16, 3
      %p246 = pnand %p244, %p245
      %p247 = pneg %p246
      // Predicated region
      $region9: #{domain_discriminator_forward.1} parent=5 // pred_check
        _
      $region10: #{domain_discriminator_forward.1} parent=5 // pred_check_branch
        %249 = sbr.rel (%p246) target = $region12
      $region11: #{domain_discriminator_forward.1} parent=5 // pred_region
        %s250 = ssub.s32 %s16, 1
        // Predicated region
        $region13: #{domain_discriminator_forward.1} parent=11 // pred_check
          %p251 = pneg %p63
        $region14: #{domain_discriminator_forward.1} parent=11 // pred_check_branch
          %253 = sbr.rel (%p251) target = $region16
        $region15: #{domain_discriminator_forward.1} parent=11 // pred_region
          _
        $region16: #{domain_discriminator_forward.1} parent=11 // pred_fallthru
          _
        // Predicated region
        $region17: #{domain_discriminator_forward.1} parent=11 // pred_check
          %p254 = pneg %p84
        $region18: #{domain_discriminator_forward.1} parent=11 // pred_check_branch
          %256 = sbr.rel (%p254) target = $region20
        $region19: #{domain_discriminator_forward.1} parent=11 // pred_region
          _
        $region20: #{domain_discriminator_forward.1} parent=11 // pred_fallthru
          _
        // Predicated region
        $region21: #{domain_discriminator_forward.1} parent=11 // pred_check
          %p257 = pneg %p105
        $region22: #{domain_discriminator_forward.1} parent=11 // pred_check_branch
          %259 = sbr.rel (%p257) target = $region24
        $region23: #{domain_discriminator_forward.1} parent=11 // pred_region
          _
        $region24: #{domain_discriminator_forward.1} parent=11 // pred_fallthru
          _
        // Predicated region
        $region25: #{domain_discriminator_forward.1} parent=11 // pred_check
          %p260 = pneg %p126
        $region26: #{domain_discriminator_forward.1} parent=11 // pred_check_branch
          %262 = sbr.rel (%p260) target = $region28
        $region27: #{domain_discriminator_forward.1} parent=11 // pred_region
          _
        $region28: #{domain_discriminator_forward.1} parent=11 // pred_fallthru
          _
        // Predicated region
        $region29: #{domain_discriminator_forward.1} parent=11 // pred_check
          %p263 = pneg %p147
        $region30: #{domain_discriminator_forward.1} parent=11 // pred_check_branch
          %265 = sbr.rel (%p263) target = $region32
        $region31: #{domain_discriminator_forward.1} parent=11 // pred_region
          _
        $region32: #{domain_discriminator_forward.1} parent=11 // pred_fallthru
          _
        // Predicated region
        $region33: #{domain_discriminator_forward.1} parent=11 // pred_check
          %p266 = pneg %p168
        $region34: #{domain_discriminator_forward.1} parent=11 // pred_check_branch
          %268 = sbr.rel (%p266) target = $region36
        $region35: #{domain_discriminator_forward.1} parent=11 // pred_region
          _
        $region36: #{domain_discriminator_forward.1} parent=11 // pred_fallthru
          _
        // Predicated region
        $region37: #{domain_discriminator_forward.1} parent=11 // pred_check
          %p269 = pneg %p189
        $region38: #{domain_discriminator_forward.1} parent=11 // pred_check_branch
          %271 = sbr.rel (%p269) target = $region40
        $region39: #{domain_discriminator_forward.1} parent=11 // pred_region
          _
        $region40: #{domain_discriminator_forward.1} parent=11 // pred_fallthru
          _
        // Predicated region
        $region41: #{domain_discriminator_forward.1} parent=11 // pred_check
          %p272 = pneg %p210
        $region42: #{domain_discriminator_forward.1} parent=11 // pred_check_branch
          %274 = sbr.rel (%p272) target = $region44
        $region43: #{domain_discriminator_forward.1} parent=11 // pred_region
          _
        $region44: #{domain_discriminator_forward.1} parent=11 // pred_fallthru
          _
      $region12: #{domain_discriminator_forward.1} parent=5 // pred_fallthru
        _
      %p275 = scmp.lt.s32.totalorder %s16, 2
      // Predicated region
      $region45: #{domain_discriminator_forward.1} parent=5 // pred_check
        %p276 = pneg %p275
      $region46: #{domain_discriminator_forward.1} parent=5 // pred_check_branch
        %278 = sbr.rel (%p276) target = $region48
      $region47: #{domain_discriminator_forward.1} parent=5 // pred_region
        // Predicated region
        $region49: #{domain_discriminator_forward.1} parent=47 // pred_check
          %p279 = pneg %p36
        $region50: #{domain_discriminator_forward.1} parent=47 // pred_check_branch
          %281 = sbr.rel (%p279) target = $region52
        $region51: #{domain_discriminator_forward.1} parent=47 // pred_region
          %s282 = smul.u32 4, %s16
          %s283 = ssub.s32 7, %s282
          %p284 = scmp.lt.s32.totalorder %s283, 4
          %s285 = scalar_select %p284, %s283, 4
          %s286 = smul.u32 128, %s285
          %p287 = scmp.lt.s32.totalorder %s282, 6
          %s288 = scalar_select %p287, %s282, 6
          %s289 = smul.addr %s288, 8
          %s290 = scalar_lea.vmem %s0, %s289
          %s291 = smul.u32 4, %s16
          %s292 = ssub.s32 7, %s291
          %p293 = scmp.lt.s32.totalorder %s292, 4
          %s294 = scalar_select %p293, %s292, 4
          %s295 = smul.u32 128, %s294
        $region52: #{domain_discriminator_forward.1} parent=47 // pred_fallthru
          _
      $region48: #{domain_discriminator_forward.1} parent=5 // pred_fallthru
        _
      %p296 = scmp.le.s32.totalorder 1, %s16
      %p297 = scmp.lt.s32.totalorder %s16, 3
      %p298 = pnand %p296, %p297
      %p299 = pneg %p298
      // Predicated region
      $region53: #{domain_discriminator_forward.1} parent=5 // pred_check
        _
      $region54: #{domain_discriminator_forward.1} parent=5 // pred_check_branch
        %301 = sbr.rel (%p298) target = $region56
      $region55: #{domain_discriminator_forward.1} parent=5 // pred_region
        %s302 = ssub.s32 %s16, 1
        %s303 = smul.u32 4, %s21
        %s304 = ssub.s32 7, %s303
        %p305 = scmp.lt.s32.totalorder %s304, 4
        %s306 = scalar_select %p305, %s304, 4
        %s307 = smul.u32 128, %s306
        %p308 = scmp.lt.s32.totalorder %s303, 6
        %s309 = scalar_select %p308, %s303, 6
        %s310 = smul.addr %s309, 8
        %s311 = scalar_lea.vmem %s0, %s310
        %p312 = pneg %p42
        %p313 = pneg %p39
        %p314 = pneg %p63
        %p315 = pneg %p60
        %p316 = pneg %p84
        %p317 = pneg %p81
        %p318 = pneg %p105
        %p319 = pneg %p102
        %p320 = pneg %p126
        %p321 = pneg %p123
        %p322 = pneg %p147
        %p323 = pneg %p144
        %p324 = pneg %p168
        %p325 = pneg %p165
        %p326 = pneg %p189
        %p327 = pneg %p186
        %p328 = pneg %p210
        %p329 = pneg %p207
        %p330 = pneg %p236
        %p331 = pneg %p233
        %s332 = sand.u32 %s223, 1
        %s333 = sand.u32 %s223, 1
        %s334 = smul.addr %s333, 32
        %s335 = scalar_lea.vmem [#allocation3], %s334
        %s336 = smul.u32 4, %s21
        %s337 = ssub.s32 7, %s336
        %p338 = scmp.lt.s32.totalorder %s337, 4
        %s339 = scalar_select %p338, %s337, 4
        %s340 = smul.u32 128, %s339
        %p341 = scmp.lt.s32.totalorder %s336, 6
        %s342 = scalar_select %p341, %s336, 6
        %s343 = smul.addr %s342, 8
        %s344 = scalar_lea.vmem %s0, %s343
        %s345 = smul.u32 4, %s21
        %s346 = ssub.s32 7, %s345
        %p347 = scmp.lt.s32.totalorder %s346, 4
        %s348 = scalar_select %p347, %s346, 4
        %s349 = smul.u32 128, %s348
        %s350 = smul.u32 4, %s21
        %s351 = ssub.s32 7, %s350
        %p352 = scmp.lt.s32.totalorder %s351, 4
        %s353 = scalar_select %p352, %s351, 4
        %s354 = smul.u32 128, %s353
        %v355 = vld [vmem:[%s344] sm:$0xff]
        %v356 = vld [vmem:[%s344 + $0x8] sm:$0xff]
        %v357 = vld [vmem:[%s344 + $0x10] sm:$0xff]
        %v358 = vld [vmem:[%s344 + $0x18] sm:$0xff]
        %v359 = vld [vmem:[%s1] sm:$0xff]
        %v360 = vld [vmem:[%s1 + $0x8] sm:$0xff]
        %v361 = vld [vmem:[%s1 + $0x10] sm:$0xff]
        %v362 = vld [vmem:[%s1 + $0x18] sm:$0xff]
        %v363 = vld [vmem:[%s2] sm:$0x1]
        %v365 = vlaneseq
        %v366 = vshrl.u32 %v365, 7
        %v367 = vsub.s32 0, %v366
        %v368 = vrot.slane %v363, %v367
        %vm370 = vcmask 261120
        %v372 = vsel %vm370, %v355, 0
        %v375 = vsel %vm370, %v356, 0
        %v378 = vsel %vm370, %v357, 0
        %v381 = vsel %vm370, %v358, 0
        %383 = vmatprep.subr.mxu0 0.0
        %384 = vmatpush1.msra.mxu0 %v359
        %385 = vmatprep.subr.mxu0 0.0
        %386 = vmatpush1.msra.mxu0 %v360
        %387 = vmatprep.subr.mxu0 0.0
        %388 = vmatpush1.msra.mxu0 %v361
        %389 = vmatprep.subr.mxu0 0.0
        %390 = vmatpush1.msra.mxu0 %v362
        %391 = vmatprep.subr.mxu0 0.0
        %392 = vmatpush1.msra.mxu0 0.0
        %393 = vmatprep.subr.mxu0 0.0
        %394 = vmatpush1.msra.mxu0 0.0
        %395 = vmatprep.subr.mxu0 0.0
        %396 = vmatpush1.msra.mxu0 0.0
        %397 = vmatprep.subr.mxu0 0.0
        %398 = vmatpush1.msra.mxu0 0.0
        %399 = vmatprep.subr.mxu0 0.0
        %400 = vmatpush1.msra.mxu0 0.0
        %401 = vmatprep.subr.mxu0 0.0
        %402 = vmatpush1.msra.mxu0 0.0
        %403 = vmatprep.subr.mxu0 0.0
        %404 = vmatpush1.msra.mxu0 0.0
        %405 = vmatprep.subr.mxu0 0.0
        %406 = vmatpush1.msra.mxu0 0.0
        %407 = vmatprep.subr.mxu0 0.0
        %408 = vmatpush1.msra.mxu0 0.0
        %409 = vmatprep.subr.mxu0 0.0
        %410 = vmatpush1.msra.mxu0 0.0
        %411 = vmatprep.subr.mxu0 0.0
        %412 = vmatpush1.msra.mxu0 0.0
        %413 = vmatprep.subr.mxu0 0.0
        %414 = vmatpush1.msra.mxu0 0.0
        %415 = vmatprep.subr.mxu0 0.0
        %416 = vmatpush1.msra.mxu0 0.0
        %417 = vmatprep.subr.mxu0 0.0
        %418 = vmatpush1.msra.mxu0 0.0
        %419 = vmatprep.subr.mxu0 0.0
        %420 = vmatpush1.msra.mxu0 0.0
        %421 = vmatprep.subr.mxu0 0.0
        %422 = vmatpush1.msra.mxu0 0.0
        %423 = vmatprep.subr.mxu0 0.0
        %424 = vmatpush1.msra.mxu0 0.0
        %425 = vmatprep.subr.mxu0 0.0
        %426 = vmatpush1.msra.mxu0 0.0
        %427 = vmatprep.subr.mxu0 0.0
        %428 = vmatpush1.msra.mxu0 0.0
        %429 = vmatprep.subr.mxu0 0.0
        %430 = vmatpush1.msra.mxu0 0.0
        %431 = vmatprep.subr.mxu0 0.0
        %432 = vmatpush1.msra.mxu0 0.0
        %433 = vmatprep.subr.mxu0 0.0
        %434 = vmatpush1.msra.mxu0 0.0
        %435 = vmatprep.subr.mxu0 0.0
        %436 = vmatpush1.msra.mxu0 0.0
        %437 = vmatprep.subr.mxu0 0.0
        %438 = vmatpush1.msra.mxu0 0.0
        %439 = vmatprep.subr.mxu0 0.0
        %440 = vmatpush1.msra.mxu0 0.0
        %441 = vmatprep.subr.mxu0 0.0
        %442 = vmatpush1.msra.mxu0 0.0
        %443 = vmatprep.subr.mxu0 0.0
        %444 = vmatpush1.msra.mxu0 0.0
        %445 = vmatprep.subr.mxu0 0.0
        %446 = vmatpush1.msra.mxu0 0.0
        %447 = vmatprep.mubr.f32.mxu0 0.0
        %448 = vmatmul.mubr.f32.gmra.mrb[0].mxu0 %v372
        %v449 = vpop.f32.mrb[0].mxu0
        %v450 = vadd.f32 %v368, %v449
        %v451 = vpop.f32.mrb[0].mxu0
        %452 = vmatprep.mubr.f32.mxu0 0.0
        %453 = vmatmul.mubr.f32.gmra.mrb[0].mxu0 %v375
        %v454 = vpop.f32.mrb[0].mxu0
        %v455 = vadd.f32 %v368, %v454
        %v456 = vpop.f32.mrb[0].mxu0
        %457 = vmatprep.mubr.f32.mxu0 0.0
        %458 = vmatmul.mubr.f32.gmra.mrb[0].mxu0 %v378
        %v459 = vpop.f32.mrb[0].mxu0
        %v460 = vadd.f32 %v368, %v459
        %v461 = vpop.f32.mrb[0].mxu0
        %462 = vmatprep.mubr.f32.mxu0 0.0
        %463 = vmatmul.mubr.f32.gmra.mrb[0].mxu0 %v381
        %v464 = vpop.f32.mrb[0].mxu0
        %v465 = vadd.f32 %v368, %v464
        %v466 = vpop.f32.mrb[0].mxu0
        %467 = vdwg.mxu0
        %vm468 = vcmp.gt.f32.partialorder %v450, 0.0
        %vm469 = vcmp.gt.f32.partialorder %v455, 0.0
        %vm470 = vcmp.gt.f32.partialorder %v460, 0.0
        %vm471 = vcmp.gt.f32.partialorder %v465, 0.0
        %v472 = vmul.f32 %v450, 0.2
        %v473 = vmul.f32 %v455, 0.2
        %v474 = vmul.f32 %v460, 0.2
        %v475 = vmul.f32 %v465, 0.2
        %v476 = vsel %vm468, %v450, %v472
        %v477 = vsel %vm469, %v455, %v473
        %v478 = vsel %vm470, %v460, %v474
        %v479 = vsel %vm471, %v465, %v475
        %v480 = vld [vmem:[%s3] sm:$0xff]
        %v481 = vld [vmem:[%s3 + $0x8] sm:$0xff]
        %v482 = vld [vmem:[%s3 + $0x10] sm:$0xff]
        %v483 = vld [vmem:[%s3 + $0x18] sm:$0xff]
        %v484 = vld [vmem:[%s3 + $0x20] sm:$0xff]
        %v485 = vld [vmem:[%s3 + $0x28] sm:$0xff]
        %v486 = vld [vmem:[%s3 + $0x30] sm:$0xff]
        %v487 = vld [vmem:[%s3 + $0x38] sm:$0xff]
        %v488 = vld [vmem:[%s4] sm:$0x1]
        %v490 = vlaneseq
        %v491 = vshrl.u32 %v490, 7
        %v492 = vsub.s32 0, %v491
        %v493 = vrot.slane %v488, %v492
        %vm495 = vcmask 523264
        %v497 = vsel %vm495, %v476, 0
        %v500 = vsel %vm495, %v477, 0
        %v503 = vsel %vm495, %v478, 0
        %v506 = vsel %vm495, %v479, 0
        %508 = vmatprep.subr.mxu0 0.0
        %509 = vmatpush1.msra.mxu0 %v480
        %510 = vmatprep.subr.mxu0 0.0
        %511 = vmatpush1.msra.mxu0 %v481
        %512 = vmatprep.subr.mxu0 0.0
        %513 = vmatpush1.msra.mxu0 %v482
        %514 = vmatprep.subr.mxu0 0.0
        %515 = vmatpush1.msra.mxu0 %v483
        %516 = vmatprep.subr.mxu0 0.0
        %517 = vmatpush1.msra.mxu0 %v484
        %518 = vmatprep.subr.mxu0 0.0
        %519 = vmatpush1.msra.mxu0 %v485
        %520 = vmatprep.subr.mxu0 0.0
        %521 = vmatpush1.msra.mxu0 %v486
        %522 = vmatprep.subr.mxu0 0.0
        %523 = vmatpush1.msra.mxu0 %v487
        %524 = vmatprep.subr.mxu0 0.0
        %525 = vmatpush1.msra.mxu0 0.0
        %526 = vmatprep.subr.mxu0 0.0
        %527 = vmatpush1.msra.mxu0 0.0
        %528 = vmatprep.subr.mxu0 0.0
        %529 = vmatpush1.msra.mxu0 0.0
        %530 = vmatprep.subr.mxu0 0.0
        %531 = vmatpush1.msra.mxu0 0.0
        %532 = vmatprep.subr.mxu0 0.0
        %533 = vmatpush1.msra.mxu0 0.0
        %534 = vmatprep.subr.mxu0 0.0
        %535 = vmatpush1.msra.mxu0 0.0
        %536 = vmatprep.subr.mxu0 0.0
        %537 = vmatpush1.msra.mxu0 0.0
        %538 = vmatprep.subr.mxu0 0.0
        %539 = vmatpush1.msra.mxu0 0.0
        %540 = vmatprep.subr.mxu0 0.0
        %541 = vmatpush1.msra.mxu0 0.0
        %542 = vmatprep.subr.mxu0 0.0
        %543 = vmatpush1.msra.mxu0 0.0
        %544 = vmatprep.subr.mxu0 0.0
        %545 = vmatpush1.msra.mxu0 0.0
        %546 = vmatprep.subr.mxu0 0.0
        %547 = vmatpush1.msra.mxu0 0.0
        %548 = vmatprep.subr.mxu0 0.0
        %549 = vmatpush1.msra.mxu0 0.0
        %550 = vmatprep.subr.mxu0 0.0
        %551 = vmatpush1.msra.mxu0 0.0
        %552 = vmatprep.subr.mxu0 0.0
        %553 = vmatpush1.msra.mxu0 0.0
        %554 = vmatprep.subr.mxu0 0.0
        %555 = vmatpush1.msra.mxu0 0.0
        %556 = vmatprep.subr.mxu0 0.0
        %557 = vmatpush1.msra.mxu0 0.0
        %558 = vmatprep.subr.mxu0 0.0
        %559 = vmatpush1.msra.mxu0 0.0
        %560 = vmatprep.subr.mxu0 0.0
        %561 = vmatpush1.msra.mxu0 0.0
        %562 = vmatprep.subr.mxu0 0.0
        %563 = vmatpush1.msra.mxu0 0.0
        %564 = vmatprep.subr.mxu0 0.0
        %565 = vmatpush1.msra.mxu0 0.0
        %566 = vmatprep.subr.mxu0 0.0
        %567 = vmatpush1.msra.mxu0 0.0
        %568 = vmatprep.subr.mxu0 0.0
        %569 = vmatpush1.msra.mxu0 0.0
        %570 = vmatprep.subr.mxu0 0.0
        %571 = vmatpush1.msra.mxu0 0.0
        %572 = vmatprep.mubr.f32.mxu0 0.0
        %573 = vmatmul.mubr.f32.gmra.mrb[0].mxu0 %v497
        %v574 = vpop.f32.mrb[0].mxu0
        %v575 = vadd.f32 %v493, %v574
        %v576 = vpop.f32.mrb[0].mxu0
        %577 = vmatprep.mubr.f32.mxu0 0.0
        %578 = vmatmul.mubr.f32.gmra.mrb[0].mxu0 %v500
        %v579 = vpop.f32.mrb[0].mxu0
        %v580 = vadd.f32 %v493, %v579
        %v581 = vpop.f32.mrb[0].mxu0
        %582 = vmatprep.mubr.f32.mxu0 0.0
        %583 = vmatmul.mubr.f32.gmra.mrb[0].mxu0 %v503
        %v584 = vpop.f32.mrb[0].mxu0
        %v585 = vadd.f32 %v493, %v584
        %v586 = vpop.f32.mrb[0].mxu0
        %587 = vmatprep.mubr.f32.mxu0 0.0
        %588 = vmatmul.mubr.f32.gmra.mrb[0].mxu0 %v506
        %v589 = vpop.f32.mrb[0].mxu0
        %v590 = vadd.f32 %v493, %v589
        %v591 = vpop.f32.mrb[0].mxu0
        %592 = vdwg.mxu0
        %v593 = vsel %vm370, %v575, 0.0
        %594 = vadd.xlane.f32.xlu0 %v593
        %v595 = vpop.xlane.xlu0 %594
        %v596 = vsel %vm370, %v580, 0.0
        %597 = vadd.xlane.f32.xlu0 %v596
        %v598 = vpop.xlane.xlu0 %597
        %v599 = vsel %vm370, %v585, 0.0
        %600 = vadd.xlane.f32.xlu0 %v599
        %v601 = vpop.xlane.xlu0 %600
        %v602 = vsel %vm370, %v590, 0.0
        %603 = vadd.xlane.f32.xlu0 %v602
        %v604 = vpop.xlane.xlu0 %603
        %v605 = vrcp.pop 32.0
        %v606 = vmul.f32 %v595, %v605
        %v607 = vmul.f32 %v598, %v605
        %v608 = vmul.f32 %v601, %v605
        %v609 = vmul.f32 %v604, %v605
        %v610 = vsub.f32 %v575, %v606
        %v611 = vsub.f32 %v580, %v607
        %v612 = vsub.f32 %v585, %v608
        %v613 = vsub.f32 %v590, %v609
        %v614 = vmul.f32 %v610, %v610
        %v615 = vmul.f32 %v611, %v611
        %v616 = vmul.f32 %v612, %v612
        %v617 = vmul.f32 %v613, %v613
        %v618 = vsel %vm370, %v614, 0.0
        %619 = vadd.xlane.f32.xlu0 %v618
        %v620 = vpop.xlane.xlu0 %619
        %v621 = vsel %vm370, %v615, 0.0
        %622 = vadd.xlane.f32.xlu0 %v621
        %v623 = vpop.xlane.xlu0 %622
        %v624 = vsel %vm370, %v616, 0.0
        %625 = vadd.xlane.f32.xlu0 %v624
        %v626 = vpop.xlane.xlu0 %625
        %v627 = vsel %vm370, %v617, 0.0
        %628 = vadd.xlane.f32.xlu0 %v627
        %v629 = vpop.xlane.xlu0 %628
        %v630 = vmul.f32 %v620, %v605
        %v631 = vmul.f32 %v623, %v605
        %v632 = vmul.f32 %v626, %v605
        %v633 = vmul.f32 %v629, %v605
        %v634 = vadd.f32 %v630, 1e-05
        %v635 = vadd.f32 %v631, 1e-05
        %v636 = vadd.f32 %v632, 1e-05
        %v637 = vadd.f32 %v633, 1e-05
        %v638 = vrsqrt.pop %v634
        %v639 = vrsqrt.pop %v635
        %v640 = vrsqrt.pop %v636
        %v641 = vrsqrt.pop %v637
        %v642 = vmul.f32 %v610, %v638
        %v643 = vmul.f32 %v611, %v639
        %v644 = vmul.f32 %v612, %v640
        %v645 = vmul.f32 %v613, %v641
        %v646 = vld [vmem:[%s5] sm:$0x1]
        %v648 = vlaneseq
        %v649 = vshrl.u32 %v648, 7
        %v650 = vsub.s32 0, %v649
        %v651 = vrot.slane %v646, %v650
        %v653 = vmul.f32 %v642, %v651
        %v654 = vmul.f32 %v643, %v651
        %v655 = vmul.f32 %v644, %v651
        %v656 = vmul.f32 %v645, %v651
        %v657 = vld [vmem:[%s6] sm:$0x1]
        %v659 = vlaneseq
        %v660 = vshrl.u32 %v659, 7
        %v661 = vsub.s32 0, %v660
        %v662 = vrot.slane %v657, %v661
        %v664 = vadd.f32 %v653, %v662
        %v665 = vadd.f32 %v654, %v662
        %v666 = vadd.f32 %v655, %v662
        %v667 = vadd.f32 %v656, %v662
        %vm668 = vcmp.gt.f32.partialorder %v664, 0.0
        %vm669 = vcmp.gt.f32.partialorder %v665, 0.0
        %vm670 = vcmp.gt.f32.partialorder %v666, 0.0
        %vm671 = vcmp.gt.f32.partialorder %v667, 0.0
        %v672 = vmul.f32 %v664, 0.2
        %v673 = vmul.f32 %v665, 0.2
        %v674 = vmul.f32 %v666, 0.2
        %v675 = vmul.f32 %v667, 0.2
        %v676 = vsel %vm668, %v664, %v672
        %v677 = vsel %vm669, %v665, %v673
        %v678 = vsel %vm670, %v666, %v674
        %v679 = vsel %vm671, %v667, %v675
        %v680 = vld [vmem:[%s7] sm:$0x1]
        %v682 = vlaneseq
        %v683 = vshrl.u32 %v682, 7
        %v684 = vsub.s32 0, %v683
        %v685 = vrot.slane %v680, %v684
        %v687 = vmul.f32 %v676, %v685
        %v688 = vmul.f32 %v677, %v685
        %v689 = vmul.f32 %v678, %v685
        %v690 = vmul.f32 %v679, %v685
        %v691 = vsel %vm370, %v687, 0.0
        %692 = vadd.xlane.f32.xlu0 %v691
        %v693 = vpop.xlane.xlu0 %692
        %v694 = vsel %vm370, %v688, 0.0
        %695 = vadd.xlane.f32.xlu0 %v694
        %v696 = vpop.xlane.xlu0 %695
        %v697 = vsel %vm370, %v689, 0.0
        %698 = vadd.xlane.f32.xlu0 %v697
        %v699 = vpop.xlane.xlu0 %698
        %v700 = vsel %vm370, %v690, 0.0
        %701 = vadd.xlane.f32.xlu0 %v700
        %v702 = vpop.xlane.xlu0 %701
        %s703 = sld [smem:[#allocation2]]
        %v704 = vstv %s703
        %v705 = vadd.f32 %v693, %v704
        %v706 = vadd.f32 %v696, %v704
        %v707 = vadd.f32 %v699, %v704
        %v708 = vadd.f32 %v702, %v704
        %vm709 = vcmask 7168
        %710 = vst.msk [vmem:[%s335] sm:$0xff] %vm709, %v705
        %711 = vst.msk [vmem:[%s335 + $0x8] sm:$0xff] %vm709, %v706
        %712 = vst.msk [vmem:[%s335 + $0x10] sm:$0xff] %vm709, %v707
        %713 = vst.msk [vmem:[%s335 + $0x18] sm:$0xff] %vm709, %v708
        %s714 = sand.u32 %s223, 1
        %s715 = sand.u32 %s223, 1
        %s716 = smul.addr %s715, 32
        %s717 = scalar_lea.vmem [#allocation3], %s716
        // Predicated region
        $region57: #{domain_discriminator_forward.1} parent=55 // pred_check
          %p718 = pneg %p233
        $region58: #{domain_discriminator_forward.1} parent=55 // pred_check_branch
          %720 = sbr.rel (%p718) target = $region60
        $region59: #{domain_discriminator_forward.1} parent=55 // pred_region
          %s721 = smul.u32 4, %s21
          %s722 = ssub.s32 7, %s721
          %p723 = scmp.lt.s32.totalorder %s722, 4
          %s724 = scalar_select %p723, %s722, 4
          %s725 = smul.u32 128, %s724
          %p726 = scmp.ne.s32.totalorder 0, %s725
          %s727 = smul.addr %s721, 8
          %s728 = scalar_lea.vmem %s9, %s727
          // Predicated region
          $region61: #{domain_discriminator_forward.1} parent=59 // pred_check
            %p729 = pneg %p726
          $region62: #{domain_discriminator_forward.1} parent=59 // pred_check_branch
            %731 = sbr.rel (%p729) target = $region64
          $region63: #{domain_discriminator_forward.1} parent=59 // pred_region
            // Predicated region
            $region65: #{domain_discriminator_forward.1} parent=63 // pred_check
              _
            $region66: #{domain_discriminator_forward.1} parent=63 // pred_check_branch
              %733 = sbr.rel (0) target = $region68
            $region67: #{domain_discriminator_forward.1} parent=63 // pred_region
              // Predicated region
              $region87: #{domain_discriminator_forward.1} parent=67 // pred_check
                _
              $region88: #{domain_discriminator_forward.1} parent=67 // pred_check_branch
                %788 = sbr.rel (0) target = $region90
              $region89: #{domain_discriminator_forward.1} parent=67 // pred_region
                %s789 = sshrl.u32 %s724, 2
                // While loop
                $region91: #{domain_discriminator_forward.1} parent=89 // loop_pre_header
                  _
                $region92: #{domain_discriminator_forward.1} parent=89 // loop_header
                  %s791 = sphi 0, %s793
                  %p792 = scmp.ge.s32.totalorder %s791, %s789
                  %s796 = sphi 0, %s809
                  %s797 = sphi %s717, %s812
                  %s798 = sphi %s728, %s813
                $region93: #{domain_discriminator_forward.1} parent=89 // loop_header_branch
                  %795 = sbr.rel (%p792) target = $region97
                $region94: #{domain_discriminator_forward.1} parent=89 // loop_body
                  %v799 = vld [vmem:[%s797] sm:$0xff]
                  %800 = vst [vmem:[%s798] sm:$0xff] %v799
                  %v801 = vld [vmem:[%s797 + $0x8] sm:$0xff]
                  %802 = vst [vmem:[%s798 + $0x8] sm:$0xff] %v801
                  %v803 = vld [vmem:[%s797 + $0x10] sm:$0xff]
                  %804 = vst [vmem:[%s798 + $0x10] sm:$0xff] %v803
                  %v805 = vld [vmem:[%s797 + $0x18] sm:$0xff]
                  %806 = vst [vmem:[%s798 + $0x18] sm:$0xff] %v805
                  %s807 = sadd.s32 1, %s796
                  %p808 = scmp.ge.s32.totalorder %s807, %s789
                  %s809 = scalar_select %p808, 0, %s807
                  %s810 = smul.u32 %s809, 32
                  %s811 = smul.u32 %s809, 32
                  %s812 = scalar_lea.vmem %s717, %s810 [#allocation3]
                  %s813 = scalar_lea.vmem %s728, %s811
                $region95: #{domain_discriminator_forward.1} parent=89 // loop_footer
                  %s793 = sadd.s32 %s791, 1
                $region96: #{domain_discriminator_forward.1} parent=89 // loop_footer_branch
                  %790 = sbr.rel target = $region92
                $region97: #{domain_discriminator_forward.1} parent=89 // loop_exit
                  _
                %s814 = sshrl.u32 %s724, 2
                %s815 = sand.u32 %s724, 3
                %s816 = smul.u32 %s814, 4
                %s817 = smul.u32 8, %s816
                %s818 = scalar_lea.vmem %s717, %s817 [#allocation3]
                %s819 = smul.u32 8, %s816
                %s820 = scalar_lea.vmem %s728, %s819
                // While loop
                $region98: #{domain_discriminator_forward.1} parent=89 // loop_pre_header
                  _
                $region99: #{domain_discriminator_forward.1} parent=89 // loop_header
                  %s822 = sphi 0, %s824
                  %p823 = scmp.ge.s32.totalorder %s822, %s815
                  %s827 = sphi 0, %s834
                  %s828 = sphi %s818, %s837
                  %s829 = sphi %s820, %s838
                $region100: #{domain_discriminator_forward.1} parent=89 // loop_header_branch
                  %826 = sbr.rel (%p823) target = $region104
                $region101: #{domain_discriminator_forward.1} parent=89 // loop_body
                  %v830 = vld [vmem:[%s828] sm:$0xff]
                  %831 = vst [vmem:[%s829] sm:$0xff] %v830
                  %s832 = sadd.s32 1, %s827
                  %p833 = scmp.ge.s32.totalorder %s832, %s815
                  %s834 = scalar_select %p833, 0, %s832
                  %s835 = smul.u32 %s834, 8
                  %s836 = smul.u32 %s834, 8
                  %s837 = scalar_lea.vmem %s818, %s835 [#allocation3]
                  %s838 = scalar_lea.vmem %s820, %s836
                $region102: #{domain_discriminator_forward.1} parent=89 // loop_footer
                  %s824 = sadd.s32 %s822, 1
                $region103: #{domain_discriminator_forward.1} parent=89 // loop_footer_branch
                  %821 = sbr.rel target = $region99
                $region104: #{domain_discriminator_forward.1} parent=89 // loop_exit
                  _
              $region90: #{domain_discriminator_forward.1} parent=67 // pred_fallthru
                _
              // Predicated region
              $region105: #{domain_discriminator_forward.1} parent=67 // pred_check
                _
              $region106: #{domain_discriminator_forward.1} parent=67 // pred_check_branch
                %840 = sbr.rel target = $region108
              $region107: #{domain_discriminator_forward.1} parent=67 // pred_region
                _
              $region108: #{domain_discriminator_forward.1} parent=67 // pred_fallthru
                _
            $region68: #{domain_discriminator_forward.1} parent=63 // pred_fallthru
              _
            // Predicated region
            $region69: #{domain_discriminator_forward.1} parent=63 // pred_check
              _
            $region70: #{domain_discriminator_forward.1} parent=63 // pred_check_branch
              %735 = sbr.rel target = $region72
            $region71: #{domain_discriminator_forward.1} parent=63 // pred_region
              %s737 = sshrl.u32 %s724, 2
              // While loop
              $region73: #{domain_discriminator_forward.1} parent=71 // loop_pre_header
                _
              $region74: #{domain_discriminator_forward.1} parent=71 // loop_header
                %s739 = sphi 0, %s741
                %p740 = scmp.ge.s32.totalorder %s739, %s737
                %s744 = sphi 0, %s757
                %s745 = sphi %s717, %s760
                %s746 = sphi %s728, %s761
              $region75: #{domain_discriminator_forward.1} parent=71 // loop_header_branch
                %743 = sbr.rel (%p740) target = $region79
              $region76: #{domain_discriminator_forward.1} parent=71 // loop_body
                %v747 = vld [vmem:[%s745] sm:$0xff]
                %748 = vst [vmem:[%s746] sm:$0xff] %v747
                %v749 = vld [vmem:[%s745 + $0x8] sm:$0xff]
                %750 = vst [vmem:[%s746 + $0x8] sm:$0xff] %v749
                %v751 = vld [vmem:[%s745 + $0x10] sm:$0xff]
                %752 = vst [vmem:[%s746 + $0x10] sm:$0xff] %v751
                %v753 = vld [vmem:[%s745 + $0x18] sm:$0xff]
                %754 = vst [vmem:[%s746 + $0x18] sm:$0xff] %v753
                %s755 = sadd.s32 1, %s744
                %p756 = scmp.ge.s32.totalorder %s755, %s737
                %s757 = scalar_select %p756, 0, %s755
                %s758 = smul.u32 %s757, 32
                %s759 = smul.u32 %s757, 32
                %s760 = scalar_lea.vmem %s717, %s758 [#allocation3]
                %s761 = scalar_lea.vmem %s728, %s759
              $region77: #{domain_discriminator_forward.1} parent=71 // loop_footer
                %s741 = sadd.s32 %s739, 1
              $region78: #{domain_discriminator_forward.1} parent=71 // loop_footer_branch
                %738 = sbr.rel target = $region74
              $region79: #{domain_discriminator_forward.1} parent=71 // loop_exit
                _
              %s762 = sshrl.u32 %s724, 2
              %s763 = sand.u32 %s724, 3
              %s764 = smul.u32 %s762, 4
              %s765 = smul.u32 8, %s764
              %s766 = scalar_lea.vmem %s717, %s765 [#allocation3]
              %s767 = smul.u32 8, %s764
              %s768 = scalar_lea.vmem %s728, %s767
              // While loop
              $region80: #{domain_discriminator_forward.1} parent=71 // loop_pre_header
                _
              $region81: #{domain_discriminator_forward.1} parent=71 // loop_header
                %s770 = sphi 0, %s772
                %p771 = scmp.ge.s32.totalorder %s770, %s763
                %s775 = sphi 0, %s782
                %s776 = sphi %s766, %s785
                %s777 = sphi %s768, %s786
              $region82: #{domain_discriminator_forward.1} parent=71 // loop_header_branch
                %774 = sbr.rel (%p771) target = $region86
              $region83: #{domain_discriminator_forward.1} parent=71 // loop_body
                %v778 = vld [vmem:[%s776] sm:$0xff]
                %779 = vst [vmem:[%s777] sm:$0xff] %v778
                %s780 = sadd.s32 1, %s775
                %p781 = scmp.ge.s32.totalorder %s780, %s763
                %s782 = scalar_select %p781, 0, %s780
                %s783 = smul.u32 %s782, 8
                %s784 = smul.u32 %s782, 8
                %s785 = scalar_lea.vmem %s766, %s783 [#allocation3]
                %s786 = scalar_lea.vmem %s768, %s784
              $region84: #{domain_discriminator_forward.1} parent=71 // loop_footer
                %s772 = sadd.s32 %s770, 1
              $region85: #{domain_discriminator_forward.1} parent=71 // loop_footer_branch
                %769 = sbr.rel target = $region81
              $region86: #{domain_discriminator_forward.1} parent=71 // loop_exit
                _
            $region72: #{domain_discriminator_forward.1} parent=63 // pred_fallthru
              _
          $region64: #{domain_discriminator_forward.1} parent=59 // pred_fallthru
            _
          %841 = vnop
        $region60: #{domain_discriminator_forward.1} parent=55 // pred_fallthru
          _
      $region56: #{domain_discriminator_forward.1} parent=5 // pred_fallthru
        _
      %p842 = scmp.le.s32.totalorder 2, %s16
      // Predicated region
      $region109: #{domain_discriminator_forward.1} parent=5 // pred_check
        %p843 = pneg %p842
      $region110: #{domain_discriminator_forward.1} parent=5 // pred_check_branch
        %845 = sbr.rel (%p843) target = $region112
      $region111: #{domain_discriminator_forward.1} parent=5 // pred_region
        %s846 = ssub.s32 %s16, 2
        // Predicated region
        $region113: #{domain_discriminator_forward.1} parent=111 // pred_check
          %p847 = pneg %p239
        $region114: #{domain_discriminator_forward.1} parent=111 // pred_check_branch
          %849 = sbr.rel (%p847) target = $region116
        $region115: #{domain_discriminator_forward.1} parent=111 // pred_region
          %s850 = sand.u32 %s224, 1
          %s851 = sand.u32 %s224, 1
          %s852 = smul.addr %s851, 32
          %s853 = scalar_lea.vmem [#allocation3], %s852
        $region116: #{domain_discriminator_forward.1} parent=111 // pred_fallthru
          _
      $region112: #{domain_discriminator_forward.1} parent=5 // pred_fallthru
        _
    $region6: #{domain_discriminator_forward.1} parent=1 // loop_footer
      %s20 = sadd.s32 1, %s16
    $region7: #{domain_discriminator_forward.1} parent=1 // loop_footer_branch
      %15 = sbr.rel target = $region3
    $region8: #{domain_discriminator_forward.1} parent=1 // loop_exit
      _

</llo_original>
